<compile_context>
chip_gen: v5e
topology: v5e:2x2
jax: 0.10.0
libtpu: 0.0.40
codegen_flags: <defaults>
</compile_context>

<pallas_src>
import functools
import math

import jax
import jax.numpy as jnp
from jax.experimental import pallas as pl
from jax.experimental.pallas import tpu as pltpu


_FUSED_LIMIT_BYTES = 4 << 20      # whole-array-in-VMEM path threshold (data bytes)


def _cdiv(a, b):
    return -(-a // b)


def _sublane(itemsize):
    # Sub-32-bit dtypes pack along sublanes: (8,128) f32, (16,128) bf16, (32,128) i8.
    return 8 * max(1, 4 // itemsize)


def _hw_budgets():
    """(target tile bytes, scoped-VMEM limit) tuned per TPU generation."""
    vmem_cap = 64 << 20                           # conservative default (v7x per-TC)
    try:
        cap = getattr(pltpu.get_tpu_info(), "vmem_capacity_bytes", None)
        if cap:
            vmem_cap = int(cap)
    except Exception:
        pass
    if vmem_cap >= (96 << 20):                    # v5e / v6e: 128 MiB VMEM
        return 6 << 20, 64 << 20
    return 4 << 20, 40 << 20                      # v7x (64 MiB VMEM) or unknown


def _fused_layout(n_elems, itemsize):
    """(rows, cols, pad) for the single-block path.  The block equals the full array,
    so only the lane dim must be a multiple of 128; prefer full sublane occupancy."""
    sub = _sublane(itemsize)
    fallback = None
    for cols in (512, 1024, 256, 128):
        if n_elems % cols == 0:
            rows = n_elems // cols
            if rows % sub == 0:
                return rows, cols, 0              # exact, full vreg occupancy
            if fallback is None:
                fallback = (rows, cols, 0)        # exact, partial sublane occupancy
    if fallback is not None:
        return fallback
    cols = 128
    rows = max(1, _cdiv(n_elems, cols))
    return rows, cols, rows * cols - n_elems


def _two_pass_layout(n_elems, itemsize, target_block_bytes):
    """(rows, cols, tile_r, pad) for the tiled two-pass path."""
    sub = _sublane(itemsize)
    # Exact (pad == 0) factorizations first: no wrapper-side pad / slice copies.
    for cols in (512, 256, 1024, 128):
        if n_elems % cols:
            continue
        rows = n_elems // cols
        if rows % sub:
            continue
        max_tile_r = max(sub, (target_block_bytes // (cols * itemsize)) // sub * sub)
        tile_r, t = None, (min(rows, max_tile_r) // sub) * sub
        while t >= sub:
            if rows % t == 0:
                tile_r = t
                break
            t -= sub
        if tile_r is None:
            continue
        if rows // tile_r <= 4 * _cdiv(rows, max_tile_r):   # factorization not pathological
            return rows, cols, tile_r, 0
    # Fallback: pad to a clean tiling (costs one extra pad + slice copy).
    # TODO(synk): fold the pad into the pallas_call via tail-tile masking to drop the copy.
    cols = 512
    max_tile_r = max(sub, (target_block_bytes // (cols * itemsize)) // sub * sub)
    rows_min = _cdiv(_cdiv(n_elems, cols), sub) * sub
    tile_r = min(rows_min, max_tile_r)
    rows = _cdiv(rows_min, tile_r) * tile_r
    return rows, cols, tile_r, rows * cols - n_elems


def _elementwise_flow(d, vx, vy, wx, wy, af, mf):
    """AEG elementwise flow on an already-standardized f32 tile."""
    v = d * (1.0 + vy) + vx
    w = d * (1.0 + wy) + wx
    # sigmoid(w) = 1/(1+exp(-w)); approx reciprocal keeps the divide on the EUP slot.
    sig = pl.reciprocal(1.0 + jnp.exp(-w), approx=True)
    dx = af * (v * sig)          # torch.sum(..., dim=-1) over a size-1 dim == identity
    dy = mf * jnp.tanh(d)
    return d * (1.0 + dy) + dx


def _fused_kernel(n_elems, pad, params_ref, x_ref, o_ref):
    """Whole array resident in VMEM: exact two-pass mean/std + elementwise flow.
    params_ref (SMEM f32[6]) = [vx, vy, wx, wy, afactor, mfactor]."""
    vx, vy = params_ref[0], params_ref[1]
    wx, wy = params_ref[2], params_ref[3]
    af, mf = params_ref[4], params_ref[5]

    x = x_ref[...].astype(jnp.float32)
    nf = jnp.float32(n_elems)
    mean = jnp.sum(x) / nf                        # padded zeros contribute nothing here
    cen = x - mean
    # ... but each padded zero contributes mean^2 to the centred sum of squares.
    var = (jnp.sum(cen * cen) - jnp.float32(pad) * mean * mean) / (nf - 1.0)
    d = cen * jax.lax.rsqrt(jnp.maximum(var, 0.0))
    o_ref[...] = _elementwise_flow(d, vx, vy, wx, wy, af, mf).astype(o_ref.dtype)


def _reduce_kernel(n_row_tiles, pivot_ref, x_ref, sum_ref, sq_ref):
    """Pass 1: per-split partial sums of (x - pivot) and (x - pivot)^2 into (8, cols)
    vector accumulators.  grid = (n_splits 'parallel', tiles_per_split 'arbitrary');
    output blocks stay resident across the arbitrary axis so accumulation is pure VPU
    work hidden under the tile DMA.  Phantom tiles (odd tile count split 2-way) are
    clamped in the index map and masked out here."""
    @pl.when(pl.program_id(1) == 0)
    def _():
        sum_ref[...] = jnp.zeros_like(sum_ref)
        sq_ref[...] = jnp.zeros_like(sq_ref)

    tile_idx = pl.program_id(0) * pl.num_programs(1) + pl.program_id(1)

    @pl.when(tile_idx < n_row_tiles)
    def _():
        tile_r, cols = x_ref.shape
        xc = x_ref[...].astype(jnp.float32) - pivot_ref[0]
        xr = xc.reshape(tile_r // 8, 8, cols)     # layout no-op on the sublane-major axis
        sum_ref[...] += jnp.sum(xr, axis=0)
        sq_ref[...] += jnp.sum(xr * xr, axis=0)


def _aeg_kernel(scalars_ref, x_ref, o_ref):
    """Pass 2: elementwise AEG flow on one (tile_r, cols) tile.
    scalars_ref (SMEM f32[8]) = [mean, inv_std, vx, vy, wx, wy, afactor, mfactor]."""
    mean, inv_std = scalars_ref[0], scalars_ref[1]
    vx, vy = scalars_ref[2], scalars_ref[3]
    wx, wy = scalars_ref[4], scalars_ref[5]
    af, mf = scalars_ref[6], scalars_ref[7]
    d = (x_ref[...].astype(jnp.float32) - mean) * inv_std
    o_ref[...] = _elementwise_flow(d, vx, vy, wx, wy, af, mf).astype(o_ref.dtype)


def _param_scalars(params):
    return [jnp.asarray(params[k], jnp.float32).reshape(())
            for k in ("vx", "vy", "wx", "wy", "afactor", "mfactor")]


def opt_aeg_v3(x, params, *, _force_two_pass=False, _target_block_bytes=None):
    shape = x.shape
    n_elems = math.prod(shape)
    itemsize = jnp.dtype(x.dtype).itemsize
    target_block_bytes, vmem_limit = _hw_budgets()
    if _target_block_bytes is not None:
        target_block_bytes = _target_block_bytes

    use_fused = (not _force_two_pass) and (n_elems * itemsize <= _FUSED_LIMIT_BYTES)

    if use_fused:
        rows, cols, pad = _fused_layout(n_elems, itemsize)
        tile_r = rows
    else:
        rows, cols, tile_r, pad = _two_pass_layout(n_elems, itemsize, target_block_bytes)

    xf = x.reshape(-1)
    if pad:                                           # rare fallback (awkward sizes only)
        xf = jnp.pad(xf, (0, pad))
    xd = xf.reshape(rows, cols)

    if use_fused:
        # ---- Fused path: one HBM read + one write (2N bytes). ----
        params_vec = jnp.stack(_param_scalars(params))
        out = pl.pallas_call(
            functools.partial(_fused_kernel, n_elems, pad),
            out_shape=jax.ShapeDtypeStruct((rows, cols), x.dtype),
            grid_spec=pl.GridSpec(
                grid=(1,),
                in_specs=[pl.BlockSpec(memory_space=pltpu.SMEM),
                          pl.BlockSpec((rows, cols), lambda i: (0, 0))],
                out_specs=pl.BlockSpec((rows, cols), lambda i: (0, 0)),
            ),
            compiler_params=pltpu.CompilerParams(
                dimension_semantics=("arbitrary",),
                vmem_limit_bytes=vmem_limit),
        )(params_vec, xd)
    else:
        n_row_tiles = rows // tile_r
        n_splits = 2 if n_row_tiles >= 2 else 1       # both TensorCores on v7x
        tiles_per_split = _cdiv(n_row_tiles, n_splits)

        # Pivot for cancellation-safe variance accumulation (first element is free).
        pivot = xd[0, 0].astype(jnp.float32)
        pivot_vec = pivot.reshape(1)

        if n_splits * tiles_per_split == n_row_tiles:
            def x_map(i, j):
                return (i * tiles_per_split + j, 0)
        else:                                         # odd tile count: clamp phantom tile
            def x_map(i, j):
                return (jnp.minimum(i * tiles_per_split + j, n_row_tiles - 1), 0)

        # ---- Pass 1: global partial sums (vector accumulators, megacore split). ----
        sum_part, sq_part = pl.pallas_call(
            functools.partial(_reduce_kernel, n_row_tiles),
            out_shape=(jax.ShapeDtypeStruct((n_splits * 8, cols), jnp.float32),
                       jax.ShapeDtypeStruct((n_splits * 8, cols), jnp.float32)),
            grid_spec=pl.GridSpec(
                grid=(n_splits, tiles_per_split),
                in_specs=[pl.BlockSpec(memory_space=pltpu.SMEM),
                          pl.BlockSpec((tile_r, cols), x_map)],
                out_specs=(pl.BlockSpec((8, cols), lambda i, j: (i, 0)),
                           pl.BlockSpec((8, cols), lambda i, j: (i, 0))),
            ),
            compiler_params=pltpu.CompilerParams(
                dimension_semantics=("parallel", "arbitrary"),
                vmem_limit_bytes=vmem_limit),
        )(pivot_vec, xd)

        # Finalize the reduction once (tiny XLA scalar math), outside the per-tile path.
        nf = jnp.float32(n_elems)
        padf = jnp.float32(pad)
        s1 = jnp.sum(sum_part) + padf * pivot            # sum over real elems of (x - p)
        s2 = jnp.sum(sq_part) - padf * pivot * pivot     # sum over real elems of (x - p)^2
        mean = pivot + s1 / nf
        dm = mean - pivot
        var = (s2 - nf * dm * dm) / (nf - 1.0)
        inv_std = jax.lax.rsqrt(jnp.maximum(var, 0.0))

        scalars = jnp.stack([mean, inv_std] + _param_scalars(params))

        # ---- Pass 2: elementwise AEG flow (lane-dense tiles, all-parallel grid). ----
        out = pl.pallas_call(
            _aeg_kernel,
            out_shape=jax.ShapeDtypeStruct((rows, cols), x.dtype),
            grid_spec=pl.GridSpec(
                grid=(n_row_tiles,),
                in_specs=[pl.BlockSpec(memory_space=pltpu.SMEM),
                          pl.BlockSpec((tile_r, cols), lambda i: (i, 0))],
                out_specs=pl.BlockSpec((tile_r, cols), lambda i: (i, 0)),
            ),
            compiler_params=pltpu.CompilerParams(
                dimension_semantics=("parallel",),
                vmem_limit_bytes=vmem_limit),
        )(scalars, xd)

    out = out.reshape(-1)
    if pad:
        out = out[:n_elems]
    return out.reshape(shape)


def _ref_forward(x, params):
    """Pure-JAX reference mirroring the PyTorch module."""
    shape = x.shape
    d = x.reshape(shape[0], -1).astype(jnp.float32)
    d = d - d.mean()
    d = d / d.std(ddof=1)
    v = d * (1.0 + params["vy"]) + params["vx"]
    w = d * (1.0 + params["wy"]) + params["wx"]
    dx = params["afactor"] * (v * jax.nn.sigmoid(w))
    dy = params["mfactor"] * jnp.tanh(d)
    d = d * (1.0 + dy) + dx
    return d.reshape(shape).astype(x.dtype)


if __name__ == "__main__":
    key = jax.random.PRNGKey(0)
    kx, kp = jax.random.split(key)

    # Deterministic parameters (same shapes as the module, perturbed from the
    # __init__ defaults 0/1 so every term of the forward pass is exercised).
    eps = 0.1 * jax.random.normal(kp, (6,), dtype=jnp.float32)
    params = {
        "vx": eps[0], "vy": 1.0 + eps[1],
        "wx": eps[2], "wy": 1.0 + eps[3],
        "afactor": eps[4], "mfactor": 1.0 + eps[5],
    }

    def _check(x, **kw):
        out = jax.block_until_ready(opt_aeg_v3(x, params, **kw))
        ref = _ref_forward(x, params)
        assert out.shape == x.shape and out.dtype == x.dtype
        assert bool(jnp.allclose(out, ref, atol=2e-3, rtol=2e-3)), "mismatch vs reference"

    # Primary: small NCHW input (fused single-block path, pad == 0).
    x = jax.random.normal(kx, (2, 4, 16, 16), dtype=jnp.float32)
    _check(x)

    # Extra coverage (still small): fused path with an awkward size needing padding.
    _check(jax.random.normal(kx, (2, 3, 5, 7), dtype=jnp.float32))

    # Two-pass tiled path: even and odd tile counts (odd exercises the phantom-tile
    # masking of the 2-way megacore split) and a padded-fallback layout.
    _check(jax.random.normal(kx, (4, 4, 64, 64), dtype=jnp.float32),
           _force_two_pass=True, _target_block_bytes=64 << 10)
    _check(jax.random.normal(kx, (5, 4, 64, 64), dtype=jnp.float32),
           _force_two_pass=True, _target_block_bytes=64 << 10)
    _check(jax.random.normal(kx, (3, 5, 29, 31), dtype=jnp.float32),
           _force_two_pass=True, _target_block_bytes=64 << 10)

    # Medium input through the default (un-forced) two-pass configuration.
    _check(jax.random.normal(kx, (8, 16, 128, 128), dtype=jnp.float32))

    print("KERNEL_OK")
</pallas_src>

<mosaic_0001>
module attributes {stable_mosaic.version = 11 : i64} {
  func.func @_fused_kernel(%arg0: i32, %arg1: memref<6xf32, #tpu.memory_space<smem>>, %arg2: memref<8x256xf32, #tpu.memory_space<vmem>>, %arg3: memref<8x256xf32, #tpu.memory_space<vmem>>) attributes {dimension_semantics = [#tpu.dimension_semantics<arbitrary>], iteration_bounds = array<i64: 1>, scalar_prefetch = 0 : i64, scratch_operands = 0 : i64, tpu.core_type = #tpu.core_type<tc>, window_params = [{transform_indices = @transform_0, window_bounds = array<i64: 6>}, {pipeline_mode = #tpu.pipeline_mode<synchronous>, transform_indices = @transform_1, window_bounds = array<i64: 8, 256>}, {pipeline_mode = #tpu.pipeline_mode<synchronous>, transform_indices = @transform_2, window_bounds = array<i64: 8, 256>}]} {
    %c0 = arith.constant 0 : index
    %0 = memref.load %arg1[%c0] : memref<6xf32, #tpu.memory_space<smem>>
    %c1 = arith.constant 1 : index
    %1 = memref.load %arg1[%c1] : memref<6xf32, #tpu.memory_space<smem>>
    %c2 = arith.constant 2 : index
    %2 = memref.load %arg1[%c2] : memref<6xf32, #tpu.memory_space<smem>>
    %c3 = arith.constant 3 : index
    %3 = memref.load %arg1[%c3] : memref<6xf32, #tpu.memory_space<smem>>
    %c4 = arith.constant 4 : index
    %4 = memref.load %arg1[%c4] : memref<6xf32, #tpu.memory_space<smem>>
    %c5 = arith.constant 5 : index
    %5 = memref.load %arg1[%c5] : memref<6xf32, #tpu.memory_space<smem>>
    %c0_0 = arith.constant 0 : index
    %c0_1 = arith.constant 0 : index
    %6 = vector.load %arg2[%c0_0, %c0_1] : memref<8x256xf32, #tpu.memory_space<vmem>>, vector<8x256xf32>
    %7 = vector.shape_cast %6 : vector<8x256xf32> to vector<1x8x256xf32>
    %cst = arith.constant dense<0.000000e+00> : vector<1xf32>
    %8 = vector.multi_reduction <add>, %7, %cst [1, 2] : vector<1x8x256xf32> to vector<1xf32>
    %9 = vector.shape_cast %8 : vector<1xf32> to vector<1x1x1xf32>
    %10 = vector.extract %9[0, 0, 0] : f32 from vector<1x1x1xf32>
    %cst_2 = arith.constant 2.048000e+03 : f32
    %11 = arith.divf %10, %cst_2 : f32
    %12 = vector.broadcast %11 : f32 to vector<8x256xf32>
    %13 = arith.subf %6, %12 : vector<8x256xf32>
    %14 = arith.mulf %13, %13 : vector<8x256xf32>
    %15 = vector.shape_cast %14 : vector<8x256xf32> to vector<1x8x256xf32>
    %cst_3 = arith.constant dense<0.000000e+00> : vector<1xf32>
    %16 = vector.multi_reduction <add>, %15, %cst_3 [1, 2] : vector<1x8x256xf32> to vector<1xf32>
    %17 = vector.shape_cast %16 : vector<1xf32> to vector<1x1x1xf32>
    %18 = vector.extract %17[0, 0, 0] : f32 from vector<1x1x1xf32>
    %cst_4 = arith.constant 0.000000e+00 : f32
    %19 = arith.mulf %cst_4, %11 : f32
    %20 = arith.mulf %19, %11 : f32
    %21 = arith.subf %18, %20 : f32
    %cst_5 = arith.constant 2.048000e+03 : f32
    %cst_6 = arith.constant 1.000000e+00 : f32
    %22 = arith.subf %cst_5, %cst_6 : f32
    %23 = arith.divf %21, %22 : f32
    %cst_7 = arith.constant 0.000000e+00 : f32
    %24 = arith.maximumf %23, %cst_7 : f32
    %25 = math.rsqrt %24 : f32
    %26 = vector.broadcast %25 : f32 to vector<8x256xf32>
    %27 = arith.mulf %13, %26 : vector<8x256xf32>
    %cst_8 = arith.constant 1.000000e+00 : f32
    %28 = arith.addf %cst_8, %1 : f32
    %29 = vector.broadcast %28 : f32 to vector<8x256xf32>
    %30 = arith.mulf %27, %29 : vector<8x256xf32>
    %31 = vector.broadcast %0 : f32 to vector<8x256xf32>
    %32 = arith.addf %30, %31 : vector<8x256xf32>
    %cst_9 = arith.constant 1.000000e+00 : f32
    %33 = arith.addf %cst_9, %3 : f32
    %34 = vector.broadcast %33 : f32 to vector<8x256xf32>
    %35 = arith.mulf %27, %34 : vector<8x256xf32>
    %36 = vector.broadcast %2 : f32 to vector<8x256xf32>
    %37 = arith.addf %35, %36 : vector<8x256xf32>
    %cst_10 = arith.constant 0.000000e+00 : f32
    %38 = vector.broadcast %cst_10 : f32 to vector<8x256xf32>
    %39 = arith.subf %38, %37 : vector<8x256xf32>
    %40 = math.exp %39 : vector<8x256xf32>
    %cst_11 = arith.constant 1.000000e+00 : f32
    %41 = vector.broadcast %cst_11 : f32 to vector<8x256xf32>
    %42 = arith.addf %41, %40 : vector<8x256xf32>
    %43 = tpu.reciprocal %42 {approx = true} : vector<8x256xf32> -> vector<8x256xf32>
    %44 = arith.mulf %32, %43 : vector<8x256xf32>
    %45 = vector.broadcast %4 : f32 to vector<8x256xf32>
    %46 = arith.mulf %45, %44 : vector<8x256xf32>
    %47 = math.tanh %27 : vector<8x256xf32>
    %48 = vector.broadcast %5 : f32 to vector<8x256xf32>
    %49 = arith.mulf %48, %47 : vector<8x256xf32>
    %cst_12 = arith.constant 1.000000e+00 : f32
    %50 = vector.broadcast %cst_12 : f32 to vector<8x256xf32>
    %51 = arith.addf %50, %49 : vector<8x256xf32>
    %52 = arith.mulf %27, %51 : vector<8x256xf32>
    %53 = arith.addf %52, %46 : vector<8x256xf32>
    %c0_13 = arith.constant 0 : index
    %c0_14 = arith.constant 0 : index
    %54 = vector.load %arg3[%c0_13, %c0_14] : memref<8x256xf32, #tpu.memory_space<vmem>>, vector<8x256xf32>
    tpu.vector_store %arg3[%c0_13, %c0_14], %53 {strides = array<i32>} : memref<8x256xf32, #tpu.memory_space<vmem>>, vector<8x256xf32>,
    return
  }
  func.func @transform_0(%arg0: i32) -> i32 {
    %c0_i32 = arith.constant 0 : i32
    %c0_i32_0 = arith.constant 0 : i32
    return %c0_i32 : i32
  }
  func.func @transform_1(%arg0: i32) -> (i32, i32) {
    %c0_i32 = arith.constant 0 : i32
    %c0_i32_0 = arith.constant 0 : i32
    %c0_i32_1 = arith.constant 0 : i32
    return %c0_i32, %c0_i32_0 : i32, i32
  }
  func.func @transform_2(%arg0: i32) -> (i32, i32) {
    %c0_i32 = arith.constant 0 : i32
    %c0_i32_0 = arith.constant 0 : i32
    %c0_i32_1 = arith.constant 0 : i32
    return %c0_i32, %c0_i32_0 : i32, i32
  }
}

</mosaic_0001>

<llo_original>
// kernel: tpu_custom_call.1
$region0: #{tpu_custom_call.1}
  #allocation0 [shape = 'u32[]', space=smem, size = 0x4, offset = 0x4, fixed_abs, tag = 'smem constant byte address 0x4 - core index']
  #allocation1 [shape = 'u32[72,128]{1,0:T(1,128)}', space=vmem, size = 0x9000, scoped, tag = 'internal scratch']
  %s0 = inlined_call_operand.hbm [shape: f32[6], index: 0, kind: input, shape index: {}]
  %s1 = inlined_call_operand.hbm [shape: f32[8,256], index: 1, kind: input, shape index: {}]
  %s2 = inlined_call_operand.hbm [shape: f32[8,256], index: 2, kind: output, shape index: {}]
  %s3 = sld [smem:[#allocation0]]
  $region26: #{tpu_custom_call.1} parent=0
    _
  %s5 = ssub.s32 1, %s3
  %s6 = scalar_select 0, %s5, %s3
  $region1: #{tpu_custom_call.1} parent=0
    #allocation2 [shape = 'u8[512]{0}', space=smem, size = 0x200, scoped, tag = 'input window, operand 0, single buffered']
    #allocation3 [shape = 's32[1]{0}', space=sflag, size = 0x4, scoped, tag = 'scoped memory for tpu_custom_call.1']
    #allocation4 [shape = 's32[1]{0}', space=sflag, size = 0x4, scoped, tag = 'scoped memory for tpu_custom_call.1']
    #allocation5 [shape = 's32[1]{0}', space=sflag, size = 0x4, scoped, tag = 'scoped memory for tpu_custom_call.1']
    #allocation6 [shape = 'u8[8192]{0}', space=vmem, size = 0x2000, scoped, tag = 'input window, operand 1, single buffered']
    #allocation7 [shape = 'u8[8192]{0}', space=vmem, size = 0x2000, scoped, tag = 'output window, operand 0, single buffered']
    %7 = vsyncpa [#allocation5], 0
    %8 = vsyncpa [#allocation3], 0
    %9 = vsyncpa [#allocation4], 0
    // Predicated region
    $region2: #{tpu_custom_call.1} parent=1 // pred_check
      _
    $region3: #{tpu_custom_call.1} parent=1 // pred_check_branch
      %11 = sbr.rel (0) target = $region5
    $region4: #{tpu_custom_call.1} parent=1 // pred_region
      %13 = vsyncadd [#allocation5], 0
      %s15 = sshll.u32 %s0, 4
      %s16 = int_to_ptr.hbm [resolvable:$true] %s15
      %18 = dma.hbm_to_smem %s16, 16, [#allocation2], [#allocation5]
    $region5: #{tpu_custom_call.1} parent=1 // pred_fallthru
      _
    // Predicated region
    $region6: #{tpu_custom_call.1} parent=1 // pred_check
      _
    $region7: #{tpu_custom_call.1} parent=1 // pred_check_branch
      %20 = sbr.rel (0) target = $region9
    $region8: #{tpu_custom_call.1} parent=1 // pred_region
      %22 = vsyncadd [#allocation3], 0
      %s24 = sshll.u32 %s1, 4
      %s25 = int_to_ptr.hbm [resolvable:$true] %s24
      %s26 = sshll.u32 [#allocation6], 4
      %s27 = int_to_ptr.vmem [resolvable:$true] %s26
      %29 = dma.hbm_to_vmem [thread:$0]  %s25, 256, %s27, [#allocation3]
    $region9: #{tpu_custom_call.1} parent=1 // pred_fallthru
      _
    // Predicated region
    $region10: #{tpu_custom_call.1} parent=1 // pred_check
      _
    $region11: #{tpu_custom_call.1} parent=1 // pred_check_branch
      %31 = sbr.rel (0) target = $region13
    $region12: #{tpu_custom_call.1} parent=1 // pred_region
      %33 = dma.done [#allocation5], 16
    $region13: #{tpu_custom_call.1} parent=1 // pred_fallthru
      _
    // Predicated region
    $region14: #{tpu_custom_call.1} parent=1 // pred_check
      _
    $region15: #{tpu_custom_call.1} parent=1 // pred_check_branch
      %35 = sbr.rel (0) target = $region17
    $region16: #{tpu_custom_call.1} parent=1 // pred_region
      %37 = dma.done [#allocation3], 256
    $region17: #{tpu_custom_call.1} parent=1 // pred_fallthru
      _
    %38 = sfence
    %s39 = sld [smem:[#allocation2]]
    %s40 = sld [smem:[#allocation2 + $0x1]]
    %s41 = sld [smem:[#allocation2 + $0x2]]
    %s42 = sld [smem:[#allocation2 + $0x3]]
    %s43 = sld [smem:[#allocation2 + $0x4]]
    %s44 = sld [smem:[#allocation2 + $0x5]]
    %v45 = vld [vmem:[#allocation6] sm:$0xff]
    %v46 = vld [vmem:[#allocation6 + $0x8] sm:$0xff]
    %v47 = vadd.f32 %v45, %v46
    %48 = vadd.xlane.f32.xlu0 %v47
    %v49 = vpop.xlane.xlu0 %48
    %v50 = vrot.slane %v49, 4
    %v51 = vadd.f32 %v49, %v50
    %v52 = vrot.slane %v51, 2
    %v53 = vadd.f32 %v51, %v52
    %v54 = vrot.slane %v53, 1
    %v55 = vadd.f32 %v53, %v54
    %s56 = vtos %v55
    %v57 = vrcp.pop 2048.0
    %v58 = vmul.f32 2048.0, %v57
    %v59 = vsub.f32 1.0, %v58
    %v60 = vmul.f32 %v57, %v59
    %v61 = vadd.f32 %v57, %v60
    %vm62 = vweird.f32 %v57
    %v63 = vsel %vm62, %v57, %v61
    %s64 = vtos %v63
    %s65 = smul.f32 %s56, %s64
    %v66 = vstv %s65
    %v67 = vsub.f32 %v45, %v66
    %v68 = vsub.f32 %v46, %v66
    %v69 = vmul.f32 %v67, %v67
    %v70 = vmul.f32 %v68, %v68
    %v71 = vadd.f32 %v69, %v70
    %72 = vadd.xlane.f32.xlu0 %v71
    %v73 = vpop.xlane.xlu0 %72
    %v74 = vrot.slane %v73, 4
    %v75 = vadd.f32 %v73, %v74
    %v76 = vrot.slane %v75, 2
    %v77 = vadd.f32 %v75, %v76
    %v78 = vrot.slane %v77, 1
    %v79 = vadd.f32 %v77, %v78
    %s80 = vtos %v79
    %s81 = smul.f32 %s65, 0.0
    %s82 = smul.f32 %s81, %s65
    %s83 = ssub.f32 %s80, %s82
    %v84 = vrcp.pop 2047.0
    %v85 = vmul.f32 2047.0, %v84
    %v86 = vsub.f32 1.0, %v85
    %v87 = vmul.f32 %v84, %v86
    %v88 = vadd.f32 %v84, %v87
    %vm89 = vweird.f32 %v84
    %v90 = vsel %vm89, %v84, %v88
    %s91 = vtos %v90
    %s92 = smul.f32 %s83, %s91
    %s93 = smax.f32 %s92, 0.0
    %v94 = vstv %s93
    %v95 = vrsqrt.pop %v94
    %v96 = vmul.f32 %v95, %v94
    %v97 = vmul.f32 %v96, %v95
    %v98 = vmul.f32 0.5, %v97
    %v99 = vsub.f32 1.5, %v98
    %v100 = vmul.f32 %v95, %v99
    %vm101 = vweird.f32 %v94
    %vm102 = vweird.f32 %v95
    %vm103 = vmor %vm101, %vm102
    %v104 = vsel %vm103, %v95, %v100
    %s105 = vtos %v104
    %v106 = vstv %s105
    %v107 = vmul.f32 %v67, %v106
    %v108 = vmul.f32 %v68, %v106
    %s109 = sadd.f32 %s40, 1.0
    %v110 = vstv %s109
    %v111 = vmul.f32 %v107, %v110
    %v112 = vmul.f32 %v108, %v110
    %v113 = vstv %s39
    %v114 = vadd.f32 %v111, %v113
    %v115 = vadd.f32 %v112, %v113
    %s116 = sadd.f32 %s42, 1.0
    %v117 = vstv %s116
    %v118 = vmul.f32 %v107, %v117
    %v119 = vmul.f32 %v108, %v117
    %v120 = vstv %s41
    %v121 = vadd.f32 %v118, %v120
    %v122 = vadd.f32 %v119, %v120
    %v123 = vsub.f32 0.0, %v121
    %v124 = vsub.f32 0.0, %v122
    %v125 = vmul.f32 %v123, 1.442695
    %v126 = vpow.pop %v125
    %v127 = vmul.f32 %v124, 1.442695
    %v128 = vpow.pop %v127
    %v129 = vadd.f32 %v126, 1.0
    %v130 = vadd.f32 %v128, 1.0
    %v131 = vrcp.pop %v129
    %v132 = vrcp.pop %v130
    %v133 = vmul.f32 %v114, %v131
    %v134 = vmul.f32 %v115, %v132
    %v135 = vstv %s43
    %v136 = vmul.f32 %v135, %v133
    %v137 = vmul.f32 %v135, %v134
    %v138 = vtanh.pop %v107
    %v139 = vtanh.pop %v108
    %v140 = vstv %s44
    %v141 = vmul.f32 %v140, %v138
    %v142 = vmul.f32 %v140, %v139
    %v143 = vadd.f32 %v141, 1.0
    %v144 = vadd.f32 %v142, 1.0
    %v145 = vmul.f32 %v107, %v143
    %v146 = vmul.f32 %v108, %v144
    %v147 = vadd.f32 %v145, %v136
    %v148 = vadd.f32 %v146, %v137
    %149 = vst [vmem:[#allocation7] sm:$0xff] %v147
    %150 = vst [vmem:[#allocation7 + $0x8] sm:$0xff] %v148
    // Predicated region
    $region18: #{tpu_custom_call.1} parent=1 // pred_check
      _
    $region19: #{tpu_custom_call.1} parent=1 // pred_check_branch
      %152 = sbr.rel (0) target = $region21
    $region20: #{tpu_custom_call.1} parent=1 // pred_region
      %154 = vsyncadd [#allocation4], 0
      %s156 = sshll.u32 [#allocation7], 4
      %s157 = int_to_ptr.vmem [resolvable:$true] %s156
      %s158 = sshll.u32 %s2, 4
      %s159 = int_to_ptr.hbm [resolvable:$true] %s158
      %161 = dma.vmem_to_hbm [thread:$0]  %s157, 256, %s159, [#allocation4]
    $region21: #{tpu_custom_call.1} parent=1 // pred_fallthru
      _
    // Predicated region
    $region22: #{tpu_custom_call.1} parent=1 // pred_check
      _
    $region23: #{tpu_custom_call.1} parent=1 // pred_check_branch
      %163 = sbr.rel (0) target = $region25
    $region24: #{tpu_custom_call.1} parent=1 // pred_region
      %165 = dma.done [#allocation4], 256
    $region25: #{tpu_custom_call.1} parent=1 // pred_fallthru
      _
    %166 = vsyncpa [#allocation3], 1
    %167 = vsyncpa [#allocation4], 1
    %168 = vsyncpa [#allocation5], 1

</llo_original>
